<compile_context>
chip_gen: v7x
topology: tpu7x:2x2x1
jax: 0.10.0
libtpu: 0.0.40
codegen_flags: <defaults>
</compile_context>

<pallas_src>
import jax
import jax.numpy as jnp
from jax.experimental import pallas as pl
from jax.experimental.pallas import tpu as pltpu

_LANE = 128
_HW_TILE = 8192                        # lanes per reduction step (multiple of 128)
_TARGET_BLOCK_BYTES = 8 * 1024 * 1024  # ~8 MiB of input per grid step
_VMEM_BLOCK_BUDGET = 24 * 1024 * 1024  # double-buffered blocks + scratch budget
_VMEM_LIMIT_BYTES = 32 * 1024 * 1024   # raise v5e's 16 MiB scoped-VMEM default


def _round_up(v, m):
    return -(-v // m) * m


def _round_down(v, m):
    return (v // m) * m


def _make_single_step_kernel(hw):
    """One reduction step per row block: sum over the full HW extent."""
    inv_hw = 1.0 / float(hw)

    def kernel(x_ref, o_ref):
        x = x_ref[...].astype(jnp.float32)
        o_ref[...] = (jnp.sum(x, axis=-1, keepdims=True) * inv_hw).astype(o_ref.dtype)

    return kernel


def _make_multi_step_kernel(hw, hw_tile, num_k):
    """Multi-step HW reduction with a lane-dense (r, 128) f32 accumulator."""
    inv_hw = 1.0 / float(hw)
    last_k = num_k - 1
    tail_valid = hw - last_k * hw_tile      # valid lanes in the final HW tile
    needs_mask = tail_valid < hw_tile

    def fold(x_ref, acc_ref, valid):
        # Add the first `valid` lanes of the (r, hw_tile) tile into acc (r, 128)
        # using unrolled 128-lane VPU adds; only a partially-valid chunk is
        # masked, fully-invalid chunks are never loaded.
        acc = acc_ref[...]
        for j in range(-(-valid // _LANE)):
            lo = j * _LANE
            chunk = x_ref[:, lo:lo + _LANE].astype(jnp.float32)
            chunk_valid = valid - lo
            if chunk_valid < _LANE:
                lane = jax.lax.broadcasted_iota(jnp.int32, chunk.shape, 1)
                chunk = jnp.where(lane < chunk_valid, chunk, 0.0)
            acc = acc + chunk
        acc_ref[...] = acc

    def kernel(x_ref, o_ref, acc_ref):
        k = pl.program_id(1)

        @pl.when(k == 0)
        def _init():
            acc_ref[...] = jnp.zeros_like(acc_ref)

        if needs_mask:
            # Mask only on the final reduction step; cheap path everywhere else.
            @pl.when(k == last_k)
            def _tail_step():
                fold(x_ref, acc_ref, tail_valid)

            @pl.when(k != last_k)
            def _full_step():
                fold(x_ref, acc_ref, hw_tile)
        else:
            fold(x_ref, acc_ref, hw_tile)

        @pl.when(k == last_k)
        def _finalize():
            total = jnp.sum(acc_ref[...], axis=-1, keepdims=True)
            o_ref[...] = (total * inv_hw).astype(o_ref.dtype)

    return kernel


def global_avg_pool_2d(x):
    """x: (N, C, H, W) -> (N, C), matching inputs.view(N, C, -1).mean(dim=2)."""
    n, c, h, w = x.shape
    hw = h * w
    nc = n * c
    x_flat = x.reshape(nc, hw)

    dbytes = jnp.dtype(x.dtype).itemsize
    sublane = max(8, 32 // dbytes)          # f32: 8, bf16: 16, int8/fp8: 32

    multi_step = hw > _HW_TILE
    t = _HW_TILE if multi_step else hw
    t_pad = _round_up(t, _LANE)             # lane-padded VMEM width of an input block

    # Rows per block: hit ~_TARGET_BLOCK_BYTES of input per grid step, capped so
    # the double-buffered input + (lane-padded) output blocks plus the f32
    # accumulator scratch stay inside the VMEM budget.
    per_row_vmem = (2 * t_pad * dbytes) + (2 * _LANE * dbytes) + (_LANE * 4 if multi_step else 0)
    r_budget = max(sublane, _VMEM_BLOCK_BUDGET // per_row_vmem)
    r_target = max(sublane, _TARGET_BLOCK_BYTES // (t_pad * dbytes))
    r = max(sublane, _round_down(min(r_target, r_budget), sublane))

    if r >= nc:
        # Whole row extent fits in one block: split it in two so the "parallel"
        # row axis shards across both v7x TensorCores (negligible cost on 1-TC chips).
        r = _round_up(-(-nc // 2), sublane) if nc > sublane else nc

    out_shape = jax.ShapeDtypeStruct((nc, 1), x.dtype)

    if multi_step:
        num_k = pl.cdiv(hw, t)
        grid_spec = pltpu.PrefetchScalarGridSpec(
            num_scalar_prefetch=0,
            grid=(pl.cdiv(nc, r), num_k),
            in_specs=[pl.BlockSpec((r, t), lambda i, k: (i, k))],
            # Output block index is independent of k -> stays resident across the
            # reduction axis; written only on the final reduction step.
            out_specs=pl.BlockSpec((r, 1), lambda i, k: (i, 0)),
            scratch_shapes=[pltpu.VMEM((r, _LANE), jnp.float32)],
        )
        kernel = _make_multi_step_kernel(hw, t, num_k)
        dims = ("parallel", "arbitrary")
    else:
        grid_spec = pltpu.PrefetchScalarGridSpec(
            num_scalar_prefetch=0,
            grid=(pl.cdiv(nc, r),),
            in_specs=[pl.BlockSpec((r, hw), lambda i: (i, 0))],
            out_specs=pl.BlockSpec((r, 1), lambda i: (i, 0)),
        )
        kernel = _make_single_step_kernel(hw)
        dims = ("parallel",)

    out = pl.pallas_call(
        kernel,
        out_shape=out_shape,
        grid_spec=grid_spec,
        compiler_params=pltpu.CompilerParams(
            dimension_semantics=dims,
            vmem_limit_bytes=_VMEM_LIMIT_BYTES,
        ),
    )(x_flat)

    return out.reshape(n, c)


if __name__ == "__main__":
    key = jax.random.PRNGKey(0)

    # Small NCHW input consistent with the module's forward (single-step path).
    x = jax.random.normal(key, (2, 4, 16, 16), dtype=jnp.float32)
    out = jax.block_until_ready(global_avg_pool_2d(x))
    ref = x.reshape(2, 4, -1).mean(axis=2)
    assert out.shape == (2, 4)
    assert jnp.allclose(out, ref, atol=1e-5, rtol=1e-5)

    # Also exercise the tiled multi-step reduction path (HW > 8192 with a
    # partially-valid tail tile) to validate masking and the lane-dense acc.
    x2 = jax.random.normal(jax.random.PRNGKey(0), (2, 4, 100, 100), dtype=jnp.float32)
    out2 = jax.block_until_ready(global_avg_pool_2d(x2))
    ref2 = x2.reshape(2, 4, -1).mean(axis=2)
    assert jnp.allclose(out2, ref2, atol=1e-5, rtol=1e-5)

    print("KERNEL_OK")
</pallas_src>

<mosaic_0001>
module attributes {stable_mosaic.version = 11 : i64} {
  func.func @kernel(%arg0: i32, %arg1: memref<8x256xf32, #tpu.memory_space<vmem>>, %arg2: memref<8x1xf32, #tpu.memory_space<vmem>>) attributes {dimension_semantics = [#tpu.dimension_semantics<parallel>], iteration_bounds = array<i64: 1>, scalar_prefetch = 0 : i64, scratch_operands = 0 : i64, tpu.core_type = #tpu.core_type<tc>, window_params = [{transform_indices = @transform_0, window_bounds = array<i64: 8, 256>}, {transform_indices = @transform_1, window_bounds = array<i64: 8, 1>}]} {
    %c0 = arith.constant 0 : index
    %c0_0 = arith.constant 0 : index
    %0 = vector.load %arg1[%c0, %c0_0] : memref<8x256xf32, #tpu.memory_space<vmem>>, vector<8x256xf32>
    %cst = arith.constant dense<0.000000e+00> : vector<8xf32>
    %1 = vector.multi_reduction <add>, %0, %cst [1] : vector<8x256xf32> to vector<8xf32>
    %2 = vector.shape_cast %1 : vector<8xf32> to vector<8x1xf32>
    %cst_1 = arith.constant 3.906250e-03 : f32
    %3 = vector.broadcast %cst_1 : f32 to vector<8x1xf32>
    %4 = arith.mulf %2, %3 : vector<8x1xf32>
    %c0_2 = arith.constant 0 : index
    %c0_3 = arith.constant 0 : index
    %5 = vector.load %arg2[%c0_2, %c0_3] : memref<8x1xf32, #tpu.memory_space<vmem>>, vector<8x1xf32>
    tpu.vector_store %arg2[%c0_2, %c0_3], %4 {strides = array<i32>} : memref<8x1xf32, #tpu.memory_space<vmem>>, vector<8x1xf32>,
    return
  }
  func.func @transform_0(%arg0: i32) -> (i32, i32) {
    %c0_i32 = arith.constant 0 : i32
    %c0_i32_0 = arith.constant 0 : i32
    return %arg0, %c0_i32 : i32, i32
  }
  func.func @transform_1(%arg0: i32) -> (i32, i32) {
    %c0_i32 = arith.constant 0 : i32
    %c0_i32_0 = arith.constant 0 : i32
    return %arg0, %c0_i32 : i32, i32
  }
}

</mosaic_0001>

<llo_original>
// kernel: tpu_custom_call.1
$region0: #{tpu_custom_call.1}
  #allocation0 [shape = 'u32[]', space=smem, size = 0x4, offset = 0x4, fixed_abs, tag = 'smem constant byte address 0x4 - core index']
  #allocation1 [shape = 'u32[144,128]{1,0:T(1,128)}', space=vmem, size = 0x12000, scoped, tag = 'internal scratch']
  %s0 = inlined_call_operand.hbm [shape: f32[8,256], index: 0, kind: input, shape index: {}]
  %s1 = inlined_call_operand.vmem [shape: f32[8,1], index: 1, kind: output, shape index: {}]
  %s2 = sld [smem:[#allocation0]]
  $region18: #{tpu_custom_call.1} parent=0
    _
  %s4 = ssub.s32 1, %s2
  %s5 = scalar_select 0, %s4, %s2
  $region1: #{tpu_custom_call.1} parent=0
    #allocation2 [shape = 'u8[8192]{0}', space=vmem, size = 0x2000, scoped, tag = 'input window, operand 0, single buffered']
    #allocation3 [shape = 's32[1]{0}', space=sflag, size = 0x4, scoped, tag = 'scoped memory for tpu_custom_call.1']
    %6 = vsyncpa [#allocation3], 0
    // Predicated region
    $region2: #{tpu_custom_call.1} parent=1 // pred_check
      _
    $region3: #{tpu_custom_call.1} parent=1 // pred_check_branch
      %8 = sbr.rel (0) target = $region5
    $region4: #{tpu_custom_call.1} parent=1 // pred_region
      %s10 = ssub.s32 256, 256
      %11 = vsyncadd [#allocation3], %s10
      %s13 = sshll.u32 [#allocation2], 4
      %s14 = int_to_ptr.vmem [resolvable:$true] %s13
      %16 = dma.hbm_to_vmem [thread:$0]  %s0, 256, %s14, [#allocation3]
    $region5: #{tpu_custom_call.1} parent=1 // pred_fallthru
      _
    // Predicated region
    $region6: #{tpu_custom_call.1} parent=1 // pred_check
      _
    $region7: #{tpu_custom_call.1} parent=1 // pred_check_branch
      %18 = sbr.rel (0) target = $region9
    $region8: #{tpu_custom_call.1} parent=1 // pred_region
      %19 = dma.done [#allocation3], 256
    $region9: #{tpu_custom_call.1} parent=1 // pred_fallthru
      _
    %v20 = vld [vmem:[#allocation2] sm:$0xff]
    %v21 = vld [vmem:[#allocation2 + $0x8] sm:$0xff]
    %v22 = vadd.f32 %v20, %v21
    %23 = vadd.xlane.f32.xlu0 %v22
    %v24 = vpop.xlane.xlu0 %23
    %v25 = vmul.f32 %v24, 0.00390625
    %vm26 = vcmask 7168
    %27 = vst.msk [vmem:[%s1] sm:$0xff] %vm26, %v25
    // Predicated region
    $region10: #{tpu_custom_call.1} parent=1 // pred_check
      _
    $region11: #{tpu_custom_call.1} parent=1 // pred_check_branch
      %29 = sbr.rel (0) target = $region13
    $region12: #{tpu_custom_call.1} parent=1 // pred_region
      _
    $region13: #{tpu_custom_call.1} parent=1 // pred_fallthru
      _
    // Predicated region
    $region14: #{tpu_custom_call.1} parent=1 // pred_check
      _
    $region15: #{tpu_custom_call.1} parent=1 // pred_check_branch
      %31 = sbr.rel (0) target = $region17
    $region16: #{tpu_custom_call.1} parent=1 // pred_region
      _
    $region17: #{tpu_custom_call.1} parent=1 // pred_fallthru
      _
    %32 = vsyncpa [#allocation3], 1

</llo_original>
